<compile_context>
chip_gen: v7x
topology: tpu7x:2x2x1
jax: 0.10.0
libtpu: 0.0.40
codegen_flags: <defaults>
</compile_context>

<pallas_src>
import functools
import math

import jax
import jax.numpy as jnp
from jax.experimental import pallas as pl
from jax.experimental.pallas import tpu as pltpu

# same nonlinearity dictionary as the PyTorch module
NONLIN = {
    "A": jnp.tanh,
    "B": lambda v: jnp.maximum(v, 0.0),   # relu
    "C": jax.nn.sigmoid,
}


def _round_up(x, m):
    return ((x + m - 1) // m) * m


def _default_use_bf16():
    """bf16 MXU operands only where the VPU also has a bf16 path (v6e / v7x)."""
    try:
        kind = jax.devices()[0].device_kind.lower()
        return not any(v in kind for v in ("v2", "v3", "v4", "v5"))
    except Exception:
        return False


# --------------------------------------------------------------------------------------
# Kernel
# --------------------------------------------------------------------------------------
def mlp_kernel(x_ref, w_ref, b_ref, out_ref, *, nonlin_fns, d_in, out_dim,
               n_layers, first_layer_fma):
    """Fused MLP forward, feature-major.

    x_ref   : (d_in, TB)           input tile, batch on lanes
    w_ref   : (n_layers, D, D)     packed weights (PyTorch (out, in)), zero-padded
    b_ref   : (n_layers, D, 1)     packed biases, f32, zero-padded
    out_ref : (out_dim, TB)        logits tile, batch on lanes
    """
    compute_dtype = w_ref.dtype                 # bf16 on v6e/v7x fast path, f32 otherwise
    x = x_ref[...].astype(jnp.float32)          # (d_in, TB)

    # ---- layer 0 ----
    w0 = w_ref[0]                               # (D, D); zero outside (out0, d_in)
    b0 = b_ref[0]                               # (D, 1) f32
    if first_layer_fma:
        # K is tiny (e.g. 2): VPU broadcast FMAs instead of a near-empty MXU pass.
        h = w0[:, 0:1].astype(jnp.float32) * x[0:1, :]
        for j in range(1, d_in):
            h = h + w0[:, j:j + 1].astype(jnp.float32) * x[j:j + 1, :]
        h = h + b0
    else:
        h = jnp.dot(w0[:, :d_in], x.astype(compute_dtype),
                    preferred_element_type=jnp.float32) + b0
    if n_layers > 1:
        h = nonlin_fns[0](h)

    # ---- layers 1 .. n-1 ----  (padded rows/cols of W are zero -> padded rows are inert)
    for i in range(1, n_layers):
        h = jnp.dot(w_ref[i], h.astype(compute_dtype),
                    preferred_element_type=jnp.float32) + b_ref[i]
        if i < n_layers - 1:
            h = nonlin_fns[i](h)

    # lane-dense store: (out_dim, TB), TB a multiple of 128
    out_ref[...] = h[:out_dim, :].astype(out_ref.dtype)


# --------------------------------------------------------------------------------------
# Parameter handling (hoisted out of the per-call hot path)
# --------------------------------------------------------------------------------------
def init_params(key, network_structure):
    """PyTorch-style init: W (out, in), b (out,), both U(-1/sqrt(fan_in), 1/sqrt(fan_in))."""
    params = []
    for i in range(len(network_structure) - 1):
        fan_in, fan_out = network_structure[i], network_structure[i + 1]
        key, kw, kb = jax.random.split(key, 3)
        bound = 1.0 / math.sqrt(fan_in)
        w = jax.random.uniform(kw, (fan_out, fan_in), jnp.float32, -bound, bound)
        b = jax.random.uniform(kb, (fan_out,), jnp.float32, -bound, bound)
        params.append((w, b))
    return params


def prepare_packed_params(params, use_bf16_matmul=None):
    """Pack all layers into one padded weight tensor + one bias tensor (done once, not per call)."""
    if use_bf16_matmul is None:
        use_bf16_matmul = _default_use_bf16()
    structure = [params[0][0].shape[1]] + [w.shape[0] for (w, _) in params]
    D = max(8, _round_up(max(structure), 8))
    n_layers = len(params)
    Wp = jnp.zeros((n_layers, D, D), jnp.float32)
    Bp = jnp.zeros((n_layers, D, 1), jnp.float32)
    for i, (w, b) in enumerate(params):
        Wp = Wp.at[i, :w.shape[0], :w.shape[1]].set(w.astype(jnp.float32))
        Bp = Bp.at[i, :b.shape[0], 0].set(b.astype(jnp.float32))
    if use_bf16_matmul:
        Wp = Wp.astype(jnp.bfloat16)            # pre-cast once; bias / accum stay f32
    meta = {"structure": tuple(structure), "d_in": structure[0],
            "out_dim": structure[-1], "n_layers": n_layers, "D": D}
    return Wp, Bp, meta


def _choose_batch_grid(B, batch_tile=None):
    """Lane-aligned batch tiling: multiples of 128, few large steps, even step count if >1."""
    if batch_tile is not None:
        tile = _round_up(batch_tile, 128)
        return tile, _round_up(B, tile)
    b128 = _round_up(B, 128)
    if b128 <= 4096:
        return b128, b128                       # single grid step (step overhead dominates)
    steps = pl.cdiv(b128, 4096)
    if steps % 2:
        steps += 1                              # even step count keeps both v7x TCs busy
    tile = _round_up(pl.cdiv(b128, steps), 128)
    return tile, _round_up(B, tile)


# --------------------------------------------------------------------------------------
# Forward wrapper
# --------------------------------------------------------------------------------------
def spiral_classifier_forward(x, packed_params, nonlinearity_keys, *, batch_tile=None):
    Wp, Bp, meta = packed_params
    B, d_in = x.shape
    assert d_in == meta["d_in"]
    out_dim, n_layers = meta["out_dim"], meta["n_layers"]
    structure = meta["structure"]

    tile, B_pad = _choose_batch_grid(B, batch_tile)
    x_t = x.T                                   # feature-major: (d_in, B), batch on lanes
    if B_pad != B:
        x_t = jnp.pad(x_t, ((0, 0), (0, B_pad - B)))

    nonlin_fns = tuple(NONLIN[k] for k in nonlinearity_keys)
    kernel = functools.partial(
        mlp_kernel, nonlin_fns=nonlin_fns, d_in=d_in, out_dim=out_dim,
        n_layers=n_layers, first_layer_fma=(d_in <= 8))

    # advisory cost so XLA overlaps neighbouring ops with this tiny custom call
    flops = 2 * B_pad * sum(structure[i] * structure[i + 1] for i in range(n_layers))
    transc = B_pad * sum(structure[i + 1] for i in range(n_layers - 1)
                         if nonlinearity_keys[i] in ("A", "C"))
    bytes_acc = (x_t.size * x_t.dtype.itemsize + Wp.size * Wp.dtype.itemsize
                 + Bp.size * Bp.dtype.itemsize + out_dim * B_pad * x.dtype.itemsize)

    out_t = pl.pallas_call(
        kernel,
        grid=(B_pad // tile,),
        in_specs=[
            pl.BlockSpec((d_in, tile), lambda i: (0, i)),
            pl.BlockSpec(Wp.shape, lambda i: (0, 0, 0)),   # constant block -> no re-DMA
            pl.BlockSpec(Bp.shape, lambda i: (0, 0, 0)),
        ],
        out_specs=pl.BlockSpec((out_dim, tile), lambda i: (0, i)),
        out_shape=jax.ShapeDtypeStruct((out_dim, B_pad), x.dtype),
        compiler_params=pltpu.CompilerParams(dimension_semantics=("parallel",)),
        cost_estimate=pl.CostEstimate(flops=int(flops), transcendentals=int(transc),
                                      bytes_accessed=int(bytes_acc)),
    )(x_t, Wp, Bp)

    # tiny (out_dim, B) slab -> (B, out_dim) batch-major, matching the PyTorch module
    return out_t[:, :B].T


def reference_forward(x, params, nonlinearity_keys):
    h = x.astype(jnp.float32)
    nonlin_fns = [NONLIN[k] for k in nonlinearity_keys]
    for i, (w, b) in enumerate(params):
        h = h @ w.T + b[None, :]
        if i < len(params) - 1:
            h = nonlin_fns[i](h)
    return h


if __name__ == "__main__":
    # network_structure = [input=2, hidden=32, hidden=32, classes=3]; keys for 2 hidden layers
    network_structure = [2, 32, 32, 3]
    nonlinearity_keys = ["A", "B"]              # tanh, relu
    assert len(network_structure) - 2 == len(nonlinearity_keys)

    key = jax.random.PRNGKey(0)
    key, kp, kx, kr = jax.random.split(key, 4)
    params = init_params(kp, network_structure)

    packed_f32 = prepare_packed_params(params, use_bf16_matmul=False)
    packed_bf16 = prepare_packed_params(params, use_bf16_matmul=True)

    batch = 64
    x = jax.random.normal(kx, (batch, network_structure[0]), jnp.float32)
    ref = reference_forward(x, params, nonlinearity_keys)

    # f32 path (matches the PyTorch module's numerics up to f32 matmul rounding)
    out_f32 = jax.block_until_ready(
        spiral_classifier_forward(x, packed_f32, nonlinearity_keys))
    assert out_f32.shape == (batch, network_structure[-1])
    assert jnp.allclose(out_f32, ref, atol=1e-4, rtol=1e-4), "f32 path mismatch vs reference"

    # bf16-weight fast path (v6e/v7x): bf16 MXU operands, f32 accumulate/bias/nonlin
    out_bf16 = jax.block_until_ready(
        spiral_classifier_forward(x, packed_bf16, nonlinearity_keys))
    assert out_bf16.shape == (batch, network_structure[-1])
    assert jnp.allclose(out_bf16, ref, atol=1e-1, rtol=1e-1), "bf16 path mismatch vs reference"

    # ragged batch + explicit multi-step grid (300 rows -> 3 tiles of 128 lanes)
    xr = jax.random.normal(kr, (300, network_structure[0]), jnp.float32)
    out_r = jax.block_until_ready(
        spiral_classifier_forward(xr, packed_f32, nonlinearity_keys, batch_tile=128))
    assert jnp.allclose(out_r, reference_forward(xr, params, nonlinearity_keys),
                        atol=1e-4, rtol=1e-4), "ragged multi-step mismatch vs reference"

    print("KERNEL_OK")
</pallas_src>

<mosaic_0001>
module attributes {stable_mosaic.version = 11 : i64} {
  func.func @mlp_kernel(%arg0: i32, %arg1: memref<2x128xf32, #tpu.memory_space<vmem>>, %arg2: memref<3x32x32xf32, #tpu.memory_space<vmem>>, %arg3: memref<3x32x1xf32, #tpu.memory_space<vmem>>, %arg4: memref<3x128xf32, #tpu.memory_space<vmem>>) attributes {dimension_semantics = [#tpu.dimension_semantics<parallel>], iteration_bounds = array<i64: 1>, scalar_prefetch = 0 : i64, scratch_operands = 0 : i64, tpu.core_type = #tpu.core_type<tc>, window_params = [{transform_indices = @transform_0, window_bounds = array<i64: 2, 128>}, {pipeline_mode = #tpu.pipeline_mode<synchronous>, transform_indices = @transform_1, window_bounds = array<i64: 3, 32, 32>}, {pipeline_mode = #tpu.pipeline_mode<synchronous>, transform_indices = @transform_2, window_bounds = array<i64: 3, 32, 1>}, {transform_indices = @transform_3, window_bounds = array<i64: 3, 128>}]} {
    %c0 = arith.constant 0 : index
    %c0_0 = arith.constant 0 : index
    %0 = vector.load %arg1[%c0, %c0_0] : memref<2x128xf32, #tpu.memory_space<vmem>>, vector<2x128xf32>
    %c0_1 = arith.constant 0 : index
    %c0_2 = arith.constant 0 : index
    %c0_3 = arith.constant 0 : index
    %1 = vector.load %arg2[%c0_1, %c0_2, %c0_3] : memref<3x32x32xf32, #tpu.memory_space<vmem>>, vector<1x32x32xf32>
    %2 = vector.shape_cast %1 : vector<1x32x32xf32> to vector<32x32xf32>
    %c0_4 = arith.constant 0 : index
    %c0_5 = arith.constant 0 : index
    %c0_6 = arith.constant 0 : index
    %3 = vector.load %arg3[%c0_4, %c0_5, %c0_6] : memref<3x32x1xf32, #tpu.memory_space<vmem>>, vector<1x32x1xf32>
    %4 = vector.shape_cast %3 : vector<1x32x1xf32> to vector<32x1xf32>
    %5 = vector.extract_strided_slice %2 {offsets = [0, 0], sizes = [32, 1], strides = [1, 1]} : vector<32x32xf32> to vector<32x1xf32>
    %6 = vector.extract_strided_slice %0 {offsets = [0, 0], sizes = [1, 128], strides = [1, 1]} : vector<2x128xf32> to vector<1x128xf32>
    %7 = vector.broadcast %5 : vector<32x1xf32> to vector<32x128xf32>
    %8 = vector.broadcast %6 : vector<1x128xf32> to vector<32x128xf32>
    %9 = arith.mulf %7, %8 : vector<32x128xf32>
    %10 = vector.extract_strided_slice %2 {offsets = [0, 1], sizes = [32, 1], strides = [1, 1]} : vector<32x32xf32> to vector<32x1xf32>
    %11 = vector.extract_strided_slice %0 {offsets = [1, 0], sizes = [1, 128], strides = [1, 1]} : vector<2x128xf32> to vector<1x128xf32>
    %12 = vector.broadcast %10 : vector<32x1xf32> to vector<32x128xf32>
    %13 = vector.broadcast %11 : vector<1x128xf32> to vector<32x128xf32>
    %14 = arith.mulf %12, %13 : vector<32x128xf32>
    %15 = arith.addf %9, %14 : vector<32x128xf32>
    %16 = vector.broadcast %4 : vector<32x1xf32> to vector<32x128xf32>
    %17 = arith.addf %15, %16 : vector<32x128xf32>
    %18 = math.tanh %17 : vector<32x128xf32>
    %c1 = arith.constant 1 : index
    %c0_7 = arith.constant 0 : index
    %c0_8 = arith.constant 0 : index
    %19 = vector.load %arg2[%c1, %c0_7, %c0_8] : memref<3x32x32xf32, #tpu.memory_space<vmem>>, vector<1x32x32xf32>
    %20 = vector.shape_cast %19 : vector<1x32x32xf32> to vector<32x32xf32>
    %cst = arith.constant dense<0.000000e+00> : vector<32x128xf32>
    %21 = tpu.matmul %20, %18, %cst {dimension_numbers = #tpu.dot_dimension_numbers<[1], [0], [0], [1], [0, 0, 1, 1], [], []>} : vector<32x32xf32>, vector<32x128xf32>, vector<32x128xf32> -> vector<32x128xf32>
    %c1_9 = arith.constant 1 : index
    %c0_10 = arith.constant 0 : index
    %c0_11 = arith.constant 0 : index
    %22 = vector.load %arg3[%c1_9, %c0_10, %c0_11] : memref<3x32x1xf32, #tpu.memory_space<vmem>>, vector<1x32x1xf32>
    %23 = vector.shape_cast %22 : vector<1x32x1xf32> to vector<32x1xf32>
    %24 = vector.broadcast %23 : vector<32x1xf32> to vector<32x128xf32>
    %25 = arith.addf %21, %24 : vector<32x128xf32>
    %cst_12 = arith.constant 0.000000e+00 : f32
    %26 = vector.broadcast %cst_12 : f32 to vector<32x128xf32>
    %27 = arith.maximumf %25, %26 : vector<32x128xf32>
    %c2 = arith.constant 2 : index
    %c0_13 = arith.constant 0 : index
    %c0_14 = arith.constant 0 : index
    %28 = vector.load %arg2[%c2, %c0_13, %c0_14] : memref<3x32x32xf32, #tpu.memory_space<vmem>>, vector<1x32x32xf32>
    %29 = vector.shape_cast %28 : vector<1x32x32xf32> to vector<32x32xf32>
    %cst_15 = arith.constant dense<0.000000e+00> : vector<32x128xf32>
    %30 = tpu.matmul %29, %27, %cst_15 {dimension_numbers = #tpu.dot_dimension_numbers<[1], [0], [0], [1], [0, 0, 1, 1], [], []>} : vector<32x32xf32>, vector<32x128xf32>, vector<32x128xf32> -> vector<32x128xf32>
    %c2_16 = arith.constant 2 : index
    %c0_17 = arith.constant 0 : index
    %c0_18 = arith.constant 0 : index
    %31 = vector.load %arg3[%c2_16, %c0_17, %c0_18] : memref<3x32x1xf32, #tpu.memory_space<vmem>>, vector<1x32x1xf32>
    %32 = vector.shape_cast %31 : vector<1x32x1xf32> to vector<32x1xf32>
    %33 = vector.broadcast %32 : vector<32x1xf32> to vector<32x128xf32>
    %34 = arith.addf %30, %33 : vector<32x128xf32>
    %35 = vector.extract_strided_slice %34 {offsets = [0, 0], sizes = [3, 128], strides = [1, 1]} : vector<32x128xf32> to vector<3x128xf32>
    %c0_19 = arith.constant 0 : index
    %c0_20 = arith.constant 0 : index
    %36 = vector.load %arg4[%c0_19, %c0_20] : memref<3x128xf32, #tpu.memory_space<vmem>>, vector<3x128xf32>
    tpu.vector_store %arg4[%c0_19, %c0_20], %35 {strides = array<i32>} : memref<3x128xf32, #tpu.memory_space<vmem>>, vector<3x128xf32>,
    return
  }
  func.func @transform_0(%arg0: i32) -> (i32, i32) {
    %c0_i32 = arith.constant 0 : i32
    %c0_i32_0 = arith.constant 0 : i32
    return %c0_i32, %arg0 : i32, i32
  }
  func.func @transform_1(%arg0: i32) -> (i32, i32, i32) {
    %c0_i32 = arith.constant 0 : i32
    %c0_i32_0 = arith.constant 0 : i32
    %c0_i32_1 = arith.constant 0 : i32
    %c0_i32_2 = arith.constant 0 : i32
    return %c0_i32, %c0_i32_0, %c0_i32_1 : i32, i32, i32
  }
  func.func @transform_2(%arg0: i32) -> (i32, i32, i32) {
    %c0_i32 = arith.constant 0 : i32
    %c0_i32_0 = arith.constant 0 : i32
    %c0_i32_1 = arith.constant 0 : i32
    %c0_i32_2 = arith.constant 0 : i32
    return %c0_i32, %c0_i32_0, %c0_i32_1 : i32, i32, i32
  }
  func.func @transform_3(%arg0: i32) -> (i32, i32) {
    %c0_i32 = arith.constant 0 : i32
    %c0_i32_0 = arith.constant 0 : i32
    return %c0_i32, %arg0 : i32, i32
  }
}

</mosaic_0001>

<llo_original>
// kernel: tpu_custom_call.1
$region0: #{tpu_custom_call.1}
  #allocation0 [shape = 'u32[]', space=smem, size = 0x4, offset = 0x4, fixed_abs, tag = 'smem constant byte address 0x4 - core index']
  #allocation1 [shape = 'u32[144,128]{1,0:T(1,128)}', space=vmem, size = 0x12000, scoped, tag = 'internal scratch']
  %s0 = inlined_call_operand.vmem [shape: f32[2,128], index: 0, kind: input, shape index: {}]
  %s1 = inlined_call_operand.vmem [shape: f32[3,32,32], index: 1, kind: input, shape index: {}]
  %s2 = inlined_call_operand.vmem [shape: f32[3,32,1], index: 2, kind: input, shape index: {}]
  %s3 = inlined_call_operand.hbm [shape: f32[3,128], index: 3, kind: output, shape index: {}]
  %s4 = sld [smem:[#allocation0]]
  $region22: #{tpu_custom_call.1} parent=0
    _
  %s6 = ssub.s32 1, %s4
  %s7 = scalar_select 0, %s6, %s4
  $region1: #{tpu_custom_call.1} parent=0
    #allocation2 [shape = 'u8[2048]{0}', space=vmem, size = 0x800, scoped, tag = 'output window, operand 0, single buffered']
    #allocation3 [shape = 's32[1]{0}', space=sflag, size = 0x4, scoped, tag = 'scoped memory for tpu_custom_call.1']
    %8 = vsyncpa [#allocation3], 0
    // Predicated region
    $region2: #{tpu_custom_call.1} parent=1 // pred_check
      _
    $region3: #{tpu_custom_call.1} parent=1 // pred_check_branch
      %10 = sbr.rel (0) target = $region5
    $region4: #{tpu_custom_call.1} parent=1 // pred_region
      _
    $region5: #{tpu_custom_call.1} parent=1 // pred_fallthru
      _
    // Predicated region
    $region6: #{tpu_custom_call.1} parent=1 // pred_check
      _
    $region7: #{tpu_custom_call.1} parent=1 // pred_check_branch
      %12 = sbr.rel (0) target = $region9
    $region8: #{tpu_custom_call.1} parent=1 // pred_region
      _
    $region9: #{tpu_custom_call.1} parent=1 // pred_fallthru
      _
    // Predicated region
    $region10: #{tpu_custom_call.1} parent=1 // pred_check
      _
    $region11: #{tpu_custom_call.1} parent=1 // pred_check_branch
      %14 = sbr.rel (0) target = $region13
    $region12: #{tpu_custom_call.1} parent=1 // pred_region
      _
    $region13: #{tpu_custom_call.1} parent=1 // pred_fallthru
      _
    %v15 = vld [vmem:[%s0] sm:$0x3]
    %v16 = vld [vmem:[%s1] sm:$0xff]
    %v17 = vld [vmem:[%s1 + $0x8] sm:$0xff]
    %v18 = vld [vmem:[%s1 + $0x10] sm:$0xff]
    %v19 = vld [vmem:[%s1 + $0x18] sm:$0xff]
    %v20 = vld [vmem:[%s2] sm:$0xff]
    %v21 = vld [vmem:[%s2 + $0x8] sm:$0xff]
    %v22 = vld [vmem:[%s2 + $0x10] sm:$0xff]
    %v23 = vld [vmem:[%s2 + $0x18] sm:$0xff]
    %25 = vset.pattern.permute.xlu0 0
    %26 = vperm.xlu0 %25, %v16
    %v27 = vpop.permute.xlu0 %26
    %30 = vset.pattern.permute.xlu0 0
    %31 = vperm.xlu0 %30, %v17
    %v32 = vpop.permute.xlu0 %31
    %35 = vset.pattern.permute.xlu0 0
    %36 = vperm.xlu0 %35, %v18
    %v37 = vpop.permute.xlu0 %36
    %40 = vset.pattern.permute.xlu0 0
    %41 = vperm.xlu0 %40, %v19
    %v42 = vpop.permute.xlu0 %41
    %v44 = vlaneseq
    %v45 = vshrl.u32 %v44, 7
    %v46 = vsub.s32 0, %v45
    %v47 = vrot.slane %v15, %v46
    %v48 = vmul.f32 %v27, %v47
    %v49 = vmul.f32 %v32, %v47
    %v50 = vmul.f32 %v37, %v47
    %v51 = vmul.f32 %v42, %v47
    %52 = vset.pattern.permute.xlu0 1
    %53 = vperm.xlu0 %52, %v16
    %v54 = vpop.permute.xlu0 %53
    %56 = vset.pattern.permute.xlu0 1
    %57 = vperm.xlu0 %56, %v17
    %v58 = vpop.permute.xlu0 %57
    %60 = vset.pattern.permute.xlu0 1
    %61 = vperm.xlu0 %60, %v18
    %v62 = vpop.permute.xlu0 %61
    %64 = vset.pattern.permute.xlu0 1
    %65 = vperm.xlu0 %64, %v19
    %v66 = vpop.permute.xlu0 %65
    %v68 = vlaneseq
    %v69 = vshrl.u32 %v68, 7
    %v70 = vsub.s32 1, %v69
    %v71 = vrot.slane %v15, %v70
    %v72 = vmul.f32 %v54, %v71
    %v73 = vmul.f32 %v58, %v71
    %v74 = vmul.f32 %v62, %v71
    %v75 = vmul.f32 %v66, %v71
    %v76 = vadd.f32 %v48, %v72
    %v77 = vadd.f32 %v49, %v73
    %v78 = vadd.f32 %v50, %v74
    %v79 = vadd.f32 %v51, %v75
    %81 = vset.pattern.permute.xlu0 0
    %82 = vperm.xlu0 %81, %v20
    %v83 = vpop.permute.xlu0 %82
    %86 = vset.pattern.permute.xlu0 0
    %87 = vperm.xlu0 %86, %v21
    %v88 = vpop.permute.xlu0 %87
    %91 = vset.pattern.permute.xlu0 0
    %92 = vperm.xlu0 %91, %v22
    %v93 = vpop.permute.xlu0 %92
    %96 = vset.pattern.permute.xlu0 0
    %97 = vperm.xlu0 %96, %v23
    %v98 = vpop.permute.xlu0 %97
    %v100 = vadd.f32 %v76, %v83
    %v101 = vadd.f32 %v77, %v88
    %v102 = vadd.f32 %v78, %v93
    %v103 = vadd.f32 %v79, %v98
    %v104 = vtanh.pop %v100
    %v105 = vtanh.pop %v101
    %v106 = vtanh.pop %v102
    %v107 = vtanh.pop %v103
    %s108 = scalar_lea.vmem %s1, 32
    %v109 = vld [vmem:[%s108] sm:$0xff]
    %v110 = vld [vmem:[%s108 + $0x8] sm:$0xff]
    %v111 = vld [vmem:[%s108 + $0x10] sm:$0xff]
    %v112 = vld [vmem:[%s108 + $0x18] sm:$0xff]
    %s113 = scalar_lea.vmem %s2, 32
    %v114 = vld [vmem:[%s113] sm:$0xff]
    %v115 = vld [vmem:[%s113 + $0x8] sm:$0xff]
    %v116 = vld [vmem:[%s113 + $0x10] sm:$0xff]
    %v117 = vld [vmem:[%s113 + $0x18] sm:$0xff]
    %119 = vset.pattern.permute.xlu0 0
    %120 = vperm.xlu0 %119, %v114
    %v121 = vpop.permute.xlu0 %120
    %124 = vset.pattern.permute.xlu0 0
    %125 = vperm.xlu0 %124, %v115
    %v126 = vpop.permute.xlu0 %125
    %129 = vset.pattern.permute.xlu0 0
    %130 = vperm.xlu0 %129, %v116
    %v131 = vpop.permute.xlu0 %130
    %134 = vset.pattern.permute.xlu0 0
    %135 = vperm.xlu0 %134, %v117
    %v136 = vpop.permute.xlu0 %135
    %vm138 = vcmask 261120
    %v140 = vsel %vm138, %v109, 0
    %v143 = vsel %vm138, %v110, 0
    %v146 = vsel %vm138, %v111, 0
    %v149 = vsel %vm138, %v112, 0
    %151 = vmatprep.subr.mxu0 0.0
    %152 = vmatpush1.msra.mxu0 %v104
    %153 = vmatprep.subr.mxu0 0.0
    %154 = vmatpush1.msra.mxu0 %v105
    %155 = vmatprep.subr.mxu0 0.0
    %156 = vmatpush1.msra.mxu0 %v106
    %157 = vmatprep.subr.mxu0 0.0
    %158 = vmatpush1.msra.mxu0 %v107
    %159 = vmatprep.subr.mxu0 0.0
    %160 = vmatpush1.msra.mxu0 0.0
    %161 = vmatprep.subr.mxu0 0.0
    %162 = vmatpush1.msra.mxu0 0.0
    %163 = vmatprep.subr.mxu0 0.0
    %164 = vmatpush1.msra.mxu0 0.0
    %165 = vmatprep.subr.mxu0 0.0
    %166 = vmatpush1.msra.mxu0 0.0
    %167 = vmatprep.subr.mxu0 0.0
    %168 = vmatpush1.msra.mxu0 0.0
    %169 = vmatprep.subr.mxu0 0.0
    %170 = vmatpush1.msra.mxu0 0.0
    %171 = vmatprep.subr.mxu0 0.0
    %172 = vmatpush1.msra.mxu0 0.0
    %173 = vmatprep.subr.mxu0 0.0
    %174 = vmatpush1.msra.mxu0 0.0
    %175 = vmatprep.subr.mxu0 0.0
    %176 = vmatpush1.msra.mxu0 0.0
    %177 = vmatprep.subr.mxu0 0.0
    %178 = vmatpush1.msra.mxu0 0.0
    %179 = vmatprep.subr.mxu0 0.0
    %180 = vmatpush1.msra.mxu0 0.0
    %181 = vmatprep.subr.mxu0 0.0
    %182 = vmatpush1.msra.mxu0 0.0
    %183 = vmatprep.subr.mxu0 0.0
    %184 = vmatpush1.msra.mxu0 0.0
    %185 = vmatprep.subr.mxu0 0.0
    %186 = vmatpush1.msra.mxu0 0.0
    %187 = vmatprep.subr.mxu0 0.0
    %188 = vmatpush1.msra.mxu0 0.0
    %189 = vmatprep.subr.mxu0 0.0
    %190 = vmatpush1.msra.mxu0 0.0
    %191 = vmatprep.subr.mxu0 0.0
    %192 = vmatpush1.msra.mxu0 0.0
    %193 = vmatprep.subr.mxu0 0.0
    %194 = vmatpush1.msra.mxu0 0.0
    %195 = vmatprep.subr.mxu0 0.0
    %196 = vmatpush1.msra.mxu0 0.0
    %197 = vmatprep.subr.mxu0 0.0
    %198 = vmatpush1.msra.mxu0 0.0
    %199 = vmatprep.subr.mxu0 0.0
    %200 = vmatpush1.msra.mxu0 0.0
    %201 = vmatprep.subr.mxu0 0.0
    %202 = vmatpush1.msra.mxu0 0.0
    %203 = vmatprep.subr.mxu0 0.0
    %204 = vmatpush1.msra.mxu0 0.0
    %205 = vmatprep.subr.mxu0 0.0
    %206 = vmatpush1.msra.mxu0 0.0
    %207 = vmatprep.subr.mxu0 0.0
    %208 = vmatpush1.msra.mxu0 0.0
    %209 = vmatprep.subr.mxu0 0.0
    %210 = vmatpush1.msra.mxu0 0.0
    %211 = vmatprep.subr.mxu0 0.0
    %212 = vmatpush1.msra.mxu0 0.0
    %213 = vmatprep.subr.mxu0 0.0
    %214 = vmatpush1.msra.mxu0 0.0
    %215 = vmatprep.mubr.f32.mxu0 0.0
    %216 = vmatmul.mubr.f32.gmra.mrb[0].mxu0 %v140
    %v217 = vpop.f32.mrb[0].mxu0
    %v218 = vadd.f32 %v121, %v217
    %v219 = vpop.f32.mrb[0].mxu0
    %220 = vmatprep.mubr.f32.mxu0 0.0
    %221 = vmatmul.mubr.f32.gmra.mrb[0].mxu0 %v143
    %v222 = vpop.f32.mrb[0].mxu0
    %v223 = vadd.f32 %v126, %v222
    %v224 = vpop.f32.mrb[0].mxu0
    %225 = vmatprep.mubr.f32.mxu0 0.0
    %226 = vmatmul.mubr.f32.gmra.mrb[0].mxu0 %v146
    %v227 = vpop.f32.mrb[0].mxu0
    %v228 = vadd.f32 %v131, %v227
    %v229 = vpop.f32.mrb[0].mxu0
    %230 = vmatprep.mubr.f32.mxu0 0.0
    %231 = vmatmul.mubr.f32.gmra.mrb[0].mxu0 %v149
    %v232 = vpop.f32.mrb[0].mxu0
    %v233 = vadd.f32 %v136, %v232
    %v234 = vpop.f32.mrb[0].mxu0
    %235 = vdwg.mxu0
    %v236 = vmax.f32 %v218, 0.0
    %v237 = vmax.f32 %v223, 0.0
    %v238 = vmax.f32 %v228, 0.0
    %v239 = vmax.f32 %v233, 0.0
    %s240 = scalar_lea.vmem %s1, 64
    %v241 = vld [vmem:[%s240] sm:$0xff]
    %v242 = vld [vmem:[%s240 + $0x8] sm:$0xff]
    %v243 = vld [vmem:[%s240 + $0x10] sm:$0xff]
    %v244 = vld [vmem:[%s240 + $0x18] sm:$0xff]
    %s245 = scalar_lea.vmem %s2, 64
    %v246 = vld [vmem:[%s245] sm:$0xff]
    %v247 = vld [vmem:[%s245 + $0x8] sm:$0xff]
    %v248 = vld [vmem:[%s245 + $0x10] sm:$0xff]
    %v249 = vld [vmem:[%s245 + $0x18] sm:$0xff]
    %251 = vset.pattern.permute.xlu0 0
    %252 = vperm.xlu0 %251, %v246
    %v253 = vpop.permute.xlu0 %252
    %256 = vset.pattern.permute.xlu0 0
    %257 = vperm.xlu0 %256, %v247
    %v258 = vpop.permute.xlu0 %257
    %260 = vset.pattern.permute.xlu0 0
    %261 = vperm.xlu0 %260, %v248
    %v262 = vpop.permute.xlu0 %261
    %264 = vset.pattern.permute.xlu0 0
    %265 = vperm.xlu0 %264, %v249
    %v266 = vpop.permute.xlu0 %265
    %v268 = vsel %vm138, %v241, 0
    %v271 = vsel %vm138, %v242, 0
    %v274 = vsel %vm138, %v243, 0
    %v277 = vsel %vm138, %v244, 0
    %279 = vmatprep.subr.mxu0 0.0
    %280 = vmatpush1.msra.mxu0 %v236
    %281 = vmatprep.subr.mxu0 0.0
    %282 = vmatpush1.msra.mxu0 %v237
    %283 = vmatprep.subr.mxu0 0.0
    %284 = vmatpush1.msra.mxu0 %v238
    %285 = vmatprep.subr.mxu0 0.0
    %286 = vmatpush1.msra.mxu0 %v239
    %287 = vmatprep.subr.mxu0 0.0
    %288 = vmatpush1.msra.mxu0 0.0
    %289 = vmatprep.subr.mxu0 0.0
    %290 = vmatpush1.msra.mxu0 0.0
    %291 = vmatprep.subr.mxu0 0.0
    %292 = vmatpush1.msra.mxu0 0.0
    %293 = vmatprep.subr.mxu0 0.0
    %294 = vmatpush1.msra.mxu0 0.0
    %295 = vmatprep.subr.mxu0 0.0
    %296 = vmatpush1.msra.mxu0 0.0
    %297 = vmatprep.subr.mxu0 0.0
    %298 = vmatpush1.msra.mxu0 0.0
    %299 = vmatprep.subr.mxu0 0.0
    %300 = vmatpush1.msra.mxu0 0.0
    %301 = vmatprep.subr.mxu0 0.0
    %302 = vmatpush1.msra.mxu0 0.0
    %303 = vmatprep.subr.mxu0 0.0
    %304 = vmatpush1.msra.mxu0 0.0
    %305 = vmatprep.subr.mxu0 0.0
    %306 = vmatpush1.msra.mxu0 0.0
    %307 = vmatprep.subr.mxu0 0.0
    %308 = vmatpush1.msra.mxu0 0.0
    %309 = vmatprep.subr.mxu0 0.0
    %310 = vmatpush1.msra.mxu0 0.0
    %311 = vmatprep.subr.mxu0 0.0
    %312 = vmatpush1.msra.mxu0 0.0
    %313 = vmatprep.subr.mxu0 0.0
    %314 = vmatpush1.msra.mxu0 0.0
    %315 = vmatprep.subr.mxu0 0.0
    %316 = vmatpush1.msra.mxu0 0.0
    %317 = vmatprep.subr.mxu0 0.0
    %318 = vmatpush1.msra.mxu0 0.0
    %319 = vmatprep.subr.mxu0 0.0
    %320 = vmatpush1.msra.mxu0 0.0
    %321 = vmatprep.subr.mxu0 0.0
    %322 = vmatpush1.msra.mxu0 0.0
    %323 = vmatprep.subr.mxu0 0.0
    %324 = vmatpush1.msra.mxu0 0.0
    %325 = vmatprep.subr.mxu0 0.0
    %326 = vmatpush1.msra.mxu0 0.0
    %327 = vmatprep.subr.mxu0 0.0
    %328 = vmatpush1.msra.mxu0 0.0
    %329 = vmatprep.subr.mxu0 0.0
    %330 = vmatpush1.msra.mxu0 0.0
    %331 = vmatprep.subr.mxu0 0.0
    %332 = vmatpush1.msra.mxu0 0.0
    %333 = vmatprep.subr.mxu0 0.0
    %334 = vmatpush1.msra.mxu0 0.0
    %335 = vmatprep.subr.mxu0 0.0
    %336 = vmatpush1.msra.mxu0 0.0
    %337 = vmatprep.subr.mxu0 0.0
    %338 = vmatpush1.msra.mxu0 0.0
    %339 = vmatprep.subr.mxu0 0.0
    %340 = vmatpush1.msra.mxu0 0.0
    %341 = vmatprep.subr.mxu0 0.0
    %342 = vmatpush1.msra.mxu0 0.0
    %343 = vmatprep.mubr.f32.mxu0 0.0
    %344 = vmatmul.mubr.f32.gmra.mrb[0].mxu0 %v268
    %v345 = vpop.f32.mrb[0].mxu0
    %v346 = vadd.f32 %v253, %v345
    %v347 = vpop.f32.mrb[0].mxu0
    %348 = vmatprep.mubr.f32.mxu0 0.0
    %349 = vmatmul.mubr.f32.gmra.mrb[0].mxu0 %v271
    %v350 = vpop.f32.mrb[0].mxu0
    %v351 = vpop.f32.mrb[0].mxu0
    %352 = vmatprep.mubr.f32.mxu0 0.0
    %353 = vmatmul.mubr.f32.gmra.mrb[0].mxu0 %v274
    %v354 = vpop.f32.mrb[0].mxu0
    %v355 = vpop.f32.mrb[0].mxu0
    %356 = vmatprep.mubr.f32.mxu0 0.0
    %357 = vmatmul.mubr.f32.gmra.mrb[0].mxu0 %v277
    %v358 = vpop.f32.mrb[0].mxu0
    %v359 = vpop.f32.mrb[0].mxu0
    %360 = vdwg.mxu0
    %361 = vst [vmem:[#allocation2] sm:$0x7] %v346
    // Predicated region
    $region14: #{tpu_custom_call.1} parent=1 // pred_check
      _
    $region15: #{tpu_custom_call.1} parent=1 // pred_check_branch
      %363 = sbr.rel (0) target = $region17
    $region16: #{tpu_custom_call.1} parent=1 // pred_region
      %s365 = ssub.s32 64, 64
      %366 = vsyncadd [#allocation3], %s365
      %s368 = sshll.u32 [#allocation2], 4
      %s369 = int_to_ptr.vmem [resolvable:$true] %s368
      %371 = dma.vmem_to_hbm [thread:$0]  %s369, 64, %s3, [#allocation3]
    $region17: #{tpu_custom_call.1} parent=1 // pred_fallthru
      _
    // Predicated region
    $region18: #{tpu_custom_call.1} parent=1 // pred_check
      _
    $region19: #{tpu_custom_call.1} parent=1 // pred_check_branch
      %373 = sbr.rel (0) target = $region21
    $region20: #{tpu_custom_call.1} parent=1 // pred_region
      %374 = dma.done [#allocation3], 64
    $region21: #{tpu_custom_call.1} parent=1 // pred_fallthru
      _
    %375 = vsyncpa [#allocation3], 1

</llo_original>
